<compile_context>
chip_gen: v5e
topology: v5e:2x2
jax: 0.10.0
libtpu: 0.0.40
codegen_flags: <defaults>
</compile_context>

<pallas_src>
import jax
import jax.numpy as jnp
from jax.experimental import pallas as pl
from jax.experimental.pallas import tpu as pltpu


_TARGET_BLOCK_BYTES = 4 * 1024 * 1024   # per-buffer block budget
_VMEM_LIMIT_BYTES = 32 * 1024 * 1024    # scoped VMEM limit: fits v5e/v6e/v7x


def _quad_kernel(p_ref, x_ref, o_ref):
    """o = (p1*x + p2)*x + p3  (Horner). p_ref is a (3,) scalar vector in SMEM."""
    x = x_ref[...]
    o_ref[...] = (p_ref[0] * x + p_ref[1]) * x + p_ref[2]


def _round_up(v, m):
    return ((v + m - 1) // m) * m


def _run_2d(params, x2d, tile_r, tile_c):
    R, C = x2d.shape
    grid = (pl.cdiv(R, tile_r), pl.cdiv(C, tile_c))
    return pl.pallas_call(
        _quad_kernel,
        out_shape=jax.ShapeDtypeStruct((R, C), jnp.float32),
        grid_spec=pltpu.PrefetchScalarGridSpec(
            num_scalar_prefetch=0,
            grid=grid,
            in_specs=[
                # (3,) parameter vector lives whole in SMEM every step.
                pl.BlockSpec(memory_space=pltpu.MemorySpace.SMEM),
                # x tiled over (rows, lanes); lane-dense last dim.
                pl.BlockSpec((tile_r, tile_c), lambda i, j: (i, j)),
            ],
            out_specs=pl.BlockSpec((tile_r, tile_c), lambda i, j: (i, j)),
        ),
        compiler_params=pltpu.CompilerParams(
            dimension_semantics=("parallel", "parallel"),
            vmem_limit_bytes=_VMEM_LIMIT_BYTES,
        ),
    )(params, x2d)


def linear_regression_forward(params, x):
    """params: (3,) f32 = [p1, p2, p3]; x: any shape (elementwise quadratic)."""
    orig_shape = x.shape
    x = x.astype(jnp.float32)
    params = params.reshape(3).astype(jnp.float32)

    n = x.size
    if n == 0:
        return jnp.zeros(orig_shape, jnp.float32)

    # Pick a lane-dense 2-D *view* of the flat element stream (zero-copy reshape
    # of a contiguous array); never pad, never slice.
    lane_w = next((w for w in (1024, 512, 256, 128) if n % w == 0), None)

    if lane_w is not None:
        # (rows, W) view with W a multiple of 128 -> unmasked lane-dense stores.
        rows = n // lane_w
        x2d = x.reshape(rows, lane_w)
        if rows <= 8:
            tile_r = rows                                   # single full-extent block
        else:
            budget_r = max(8, (_TARGET_BLOCK_BYTES // (lane_w * 4)) // 8 * 8)
            half_r = _round_up(-(-rows // 2), 8)            # guarantees >= 2 grid steps (v7x 2 TCs)
            tile_r = max(8, min(budget_r, half_r))          # multiple of 8, < rows
        tile_c = lane_w
    else:
        # Ragged element count: (1, n) view; tile lanes, Pallas masks the tail block.
        x2d = x.reshape(1, n)
        tile_r = 1
        if n <= 128:
            tile_c = n                                      # single full-extent block
        else:
            # (1, W) blocks pad to 8 sublanes in VMEM -> budget with the 8x factor.
            budget_c = max(128, (_TARGET_BLOCK_BYTES // (8 * 4)) // 128 * 128)
            half_c = _round_up(-(-n // 2), 128)             # guarantees >= 2 grid steps
            tile_c = max(128, min(budget_c, half_c))        # multiple of 128, < n

    out2d = _run_2d(params, x2d, tile_r, tile_c)
    return out2d.reshape(orig_shape)


if __name__ == "__main__":
    key = jax.random.PRNGKey(0)
    k_p, k_x = jax.random.split(key)

    # Three scalar parameters [p1, p2, p3] (matches nn.Parameter(torch.randn(1)) x3).
    params = jax.random.normal(k_p, (3,), dtype=jnp.float32)

    # Canonical linear-regression input: an (N, 1) feature column.  N = 16384 so
    # the flattened zero-copy view is (16, 1024) and the row grid has 2 parallel
    # steps (both v7x TensorCores get work); total data is only 64 KiB.
    x = jax.random.normal(k_x, (16384, 1), dtype=jnp.float32)

    # jit so the wrapper reshapes stay zero-copy bitcasts around the kernel.
    fwd = jax.jit(linear_regression_forward)
    y = jax.block_until_ready(fwd(params, x))

    # Reference check in plain JAX (same semantics as the PyTorch module).
    y_ref = params[0] * x * x + params[1] * x + params[2]
    assert y.shape == x.shape
    assert jnp.allclose(y, y_ref, atol=1e-5, rtol=1e-5), "mismatch vs reference"

    print("KERNEL_OK")
</pallas_src>

<mosaic_0001>
module attributes {stable_mosaic.version = 11 : i64} {
  func.func @_quad_kernel(%arg0: i32, %arg1: i32, %arg2: memref<3xf32, #tpu.memory_space<smem>>, %arg3: memref<8x1024xf32, #tpu.memory_space<vmem>>, %arg4: memref<8x1024xf32, #tpu.memory_space<vmem>>) attributes {dimension_semantics = [#tpu.dimension_semantics<parallel>, #tpu.dimension_semantics<parallel>], iteration_bounds = array<i64: 2, 1>, scalar_prefetch = 0 : i64, scratch_operands = 0 : i64, tpu.core_type = #tpu.core_type<tc>, window_params = [{transform_indices = @transform_0, window_bounds = array<i64: 3>}, {transform_indices = @transform_1, window_bounds = array<i64: 8, 1024>}, {transform_indices = @transform_2, window_bounds = array<i64: 8, 1024>}]} {
    %c0 = arith.constant 0 : index
    %c0_0 = arith.constant 0 : index
    %0 = vector.load %arg3[%c0, %c0_0] : memref<8x1024xf32, #tpu.memory_space<vmem>>, vector<8x1024xf32>
    %c0_1 = arith.constant 0 : index
    %1 = memref.load %arg2[%c0_1] : memref<3xf32, #tpu.memory_space<smem>>
    %2 = vector.broadcast %1 : f32 to vector<8x1024xf32>
    %3 = arith.mulf %2, %0 : vector<8x1024xf32>
    %c1 = arith.constant 1 : index
    %4 = memref.load %arg2[%c1] : memref<3xf32, #tpu.memory_space<smem>>
    %5 = vector.broadcast %4 : f32 to vector<8x1024xf32>
    %6 = arith.addf %3, %5 : vector<8x1024xf32>
    %7 = arith.mulf %6, %0 : vector<8x1024xf32>
    %c2 = arith.constant 2 : index
    %8 = memref.load %arg2[%c2] : memref<3xf32, #tpu.memory_space<smem>>
    %9 = vector.broadcast %8 : f32 to vector<8x1024xf32>
    %10 = arith.addf %7, %9 : vector<8x1024xf32>
    %c0_2 = arith.constant 0 : index
    %c0_3 = arith.constant 0 : index
    %11 = vector.load %arg4[%c0_2, %c0_3] : memref<8x1024xf32, #tpu.memory_space<vmem>>, vector<8x1024xf32>
    tpu.vector_store %arg4[%c0_2, %c0_3], %10 {strides = array<i32>} : memref<8x1024xf32, #tpu.memory_space<vmem>>, vector<8x1024xf32>,
    return
  }
  func.func @transform_0(%arg0: i32, %arg1: i32) -> i32 {
    %c0_i32 = arith.constant 0 : i32
    %c0_i32_0 = arith.constant 0 : i32
    return %c0_i32 : i32
  }
  func.func @transform_1(%arg0: i32, %arg1: i32) -> (i32, i32) {
    %c0_i32 = arith.constant 0 : i32
    return %arg0, %arg1 : i32, i32
  }
  func.func @transform_2(%arg0: i32, %arg1: i32) -> (i32, i32) {
    %c0_i32 = arith.constant 0 : i32
    return %arg0, %arg1 : i32, i32
  }
}

</mosaic_0001>

<llo_original>
// kernel: linear_regression_forward.1
$region0: #{linear_regression_forward.1}
  #allocation0 [shape = 'u32[]', space=smem, size = 0x4, offset = 0x4, fixed_abs, tag = 'smem constant byte address 0x4 - core index']
  #allocation1 [shape = 'u32[72,128]{1,0:T(1,128)}', space=vmem, size = 0x9000, scoped, tag = 'internal scratch']
  %s0 = inlined_call_operand.vmem [shape: f32[3], index: 0, kind: input, shape index: {}]
  %s1 = inlined_call_operand.vmem [shape: f32[16,1024], index: 1, kind: input, shape index: {}]
  %s2 = inlined_call_operand.vmem [shape: f32[16,1024], index: 2, kind: output, shape index: {}]
  %s3 = sld [smem:[#allocation0]]
  $region45: #{linear_regression_forward.1} parent=0
    _
  %s5 = ssub.s32 1, %s3
  %s6 = scalar_select 0, %s5, %s3
  $region1: #{linear_regression_forward.1} parent=0
    #allocation2 [shape = 'u8[512]{0}', space=smem, size = 0x200, scoped, tag = 'input window, operand 0, single buffered']
    #allocation3 [shape = 's32[2]{0}', space=sflag, size = 0x8, scoped, tag = 'scoped memory for linear_regression_forward.1']
    %7 = vsyncpa [#allocation3], 0
    loop: start=0, step=1, limit=4
    $region2: #{linear_regression_forward.1} parent=1 // loop_pre_header
      _
    $region3: #{linear_regression_forward.1} parent=1 // loop_header
      %s9 = sphi 0, %s13
      %p10 = scmp.ge.s32.totalorder %s9, 4
      %s16 = sphi 0, %s28
      %s17 = sphi 0, %s24
      %s18 = sphi 0, %s16
      %s19 = sphi 0, %s17
      %s20 = sphi 0, %s18
      %s21 = sphi 0, %s19
      %s29 = sphi 0, %s29
      %s31 = sphi 0, %s29
      %s32 = sphi 0, %s31
      %s46 = sphi 0, %s32
      %s54 = sphi 0, %s56
      %s57 = sphi 0, %s54
      %s58 = sphi 0, %s57
      %s74 = sphi 0, %s58
      %s82 = sphi 0, %s84
      %s85 = sphi 0, %s82
      %s86 = sphi 0, %s85
      %s102 = sphi 0, %s86
    $region4: #{linear_regression_forward.1} parent=1 // loop_header_branch
      %12 = sbr.rel (%p10) target = $region8
    $region5: #{linear_regression_forward.1} parent=1 // loop_body
      %s14 = ssub.s32 %s9, 1
      %s15 = ssub.s32 %s9, 2
      %s22 = sadd.s32 1, %s17
      %p23 = scmp.ge.s32.totalorder %s22, 1
      %s24 = scalar_select %p23, 0, %s22
      %s25 = sadd.s32 1, %s16
      %s26 = scalar_select %p23, %s25, %s16
      %p27 = scmp.ge.s32.totalorder %s26, 2
      %s28 = scalar_select %p27, 0, %s26
      %s30 = sadd.s32 %s29, 1
      %p33 = scmp.eq.s32.totalorder %s9, 1
      %p34 = scmp.ne.s32.totalorder %s29, %s31
      %p35 = scmp.eq.s32.totalorder %s9, 0
      %p36 = por %p34, %p35
      %p37 = scmp.ne.s32.totalorder %s29, %s31
      %p38 = scmp.eq.s32.totalorder %s14, 1
      %p39 = por %p37, %p38
      %p40 = scmp.ne.s32.totalorder %s31, %s32
      %p41 = scmp.eq.s32.totalorder %s14, 0
      %p42 = por %p40, %p41
      %p43 = scmp.ne.s32.totalorder %s31, %s32
      %p44 = scmp.eq.s32.totalorder %s15, 1
      %p45 = por %p43, %p44
      %p47 = scmp.ne.s32.totalorder %s32, %s46
      %p48 = scmp.eq.s32.totalorder %s15, 0
      %p49 = por %p47, %p48
      %s50 = ssub.s32 %s16, %s28
      %s51 = ssub.s32 %s17, %s24
      %s52 = sor.u32 %s50, %s51
      %p53 = scmp.eq.s32.totalorder %s52, 0
      %s55 = sadd.s32 %s54, 1
      %s56 = scalar_select %p53, %s54, %s55
      %p59 = pneg %p53
      %p60 = scmp.eq.s32.totalorder %s9, 1
      %p61 = por %p59, %p60
      %p62 = scmp.ne.s32.totalorder %s54, %s57
      %p63 = scmp.eq.s32.totalorder %s9, 0
      %p64 = por %p62, %p63
      %p65 = scmp.ne.s32.totalorder %s54, %s57
      %p66 = scmp.eq.s32.totalorder %s14, 1
      %p67 = por %p65, %p66
      %p68 = scmp.ne.s32.totalorder %s57, %s58
      %p69 = scmp.eq.s32.totalorder %s14, 0
      %p70 = por %p68, %p69
      %p71 = scmp.ne.s32.totalorder %s57, %s58
      %p72 = scmp.eq.s32.totalorder %s15, 1
      %p73 = por %p71, %p72
      %p75 = scmp.ne.s32.totalorder %s58, %s74
      %p76 = scmp.eq.s32.totalorder %s15, 0
      %p77 = por %p75, %p76
      %s78 = ssub.s32 %s16, %s28
      %s79 = ssub.s32 %s17, %s24
      %s80 = sor.u32 %s78, %s79
      %p81 = scmp.eq.s32.totalorder %s80, 0
      %s83 = sadd.s32 %s82, 1
      %s84 = scalar_select %p81, %s82, %s83
      %p87 = pneg %p81
      %p88 = scmp.eq.s32.totalorder %s9, 1
      %p89 = por %p87, %p88
      %p90 = scmp.ne.s32.totalorder %s82, %s85
      %p91 = scmp.eq.s32.totalorder %s9, 0
      %p92 = por %p90, %p91
      %p93 = scmp.ne.s32.totalorder %s82, %s85
      %p94 = scmp.eq.s32.totalorder %s14, 1
      %p95 = por %p93, %p94
      %p96 = scmp.ne.s32.totalorder %s85, %s86
      %p97 = scmp.eq.s32.totalorder %s14, 0
      %p98 = por %p96, %p97
      %p99 = scmp.ne.s32.totalorder %s85, %s86
      %p100 = scmp.eq.s32.totalorder %s15, 1
      %p101 = por %p99, %p100
      %p103 = scmp.ne.s32.totalorder %s86, %s102
      %p104 = scmp.eq.s32.totalorder %s15, 0
      %p105 = por %p103, %p104
      %p106 = scmp.le.s32.totalorder 1, %s9
      %p107 = scmp.lt.s32.totalorder %s9, 3
      %p108 = pnand %p106, %p107
      %p109 = pneg %p108
      // Predicated region
      $region9: #{linear_regression_forward.1} parent=5 // pred_check
        _
      $region10: #{linear_regression_forward.1} parent=5 // pred_check_branch
        %111 = sbr.rel (%p108) target = $region12
      $region11: #{linear_regression_forward.1} parent=5 // pred_region
        %s112 = ssub.s32 %s9, 1
        // Predicated region
        $region13: #{linear_regression_forward.1} parent=11 // pred_check
          %p113 = pneg %p42
        $region14: #{linear_regression_forward.1} parent=11 // pred_check_branch
          %115 = sbr.rel (%p113) target = $region16
        $region15: #{linear_regression_forward.1} parent=11 // pred_region
          %117 = vsyncadd [#allocation3], 0
          %s119 = sshll.u32 %s0, 4
          %s120 = int_to_ptr.vmem [resolvable:$true] %s119
          %122 = dma.vmem_to_smem %s120, 16, [#allocation2], [#allocation3]
        $region16: #{linear_regression_forward.1} parent=11 // pred_fallthru
          _
      $region12: #{linear_regression_forward.1} parent=5 // pred_fallthru
        _
      %p123 = scmp.lt.s32.totalorder %s9, 2
      // Predicated region
      $region17: #{linear_regression_forward.1} parent=5 // pred_check
        %p124 = pneg %p123
      $region18: #{linear_regression_forward.1} parent=5 // pred_check_branch
        %126 = sbr.rel (%p124) target = $region20
      $region19: #{linear_regression_forward.1} parent=5 // pred_region
        // Predicated region
        $region21: #{linear_regression_forward.1} parent=19 // pred_check
          %p127 = pneg %p64
        $region22: #{linear_regression_forward.1} parent=19 // pred_check_branch
          %129 = sbr.rel (%p127) target = $region24
        $region23: #{linear_regression_forward.1} parent=19 // pred_region
          %s130 = smul.u32 8, %s17
          %p131 = scmp.lt.s32.totalorder %s16, 1
          %s132 = scalar_select %p131, %s16, 1
          %p133 = scmp.lt.s32.totalorder %s130, 7
          %s134 = scalar_select %p133, %s130, 7
          %s135 = smul.addr %s132, 8
          %s136 = sadd.s32 %s134, %s135
          %s137 = smul.addr %s136, 8
          %s138 = scalar_lea.vmem %s1, %s137
          %s139 = smul.u32 8, %s17
        $region24: #{linear_regression_forward.1} parent=19 // pred_fallthru
          _
      $region20: #{linear_regression_forward.1} parent=5 // pred_fallthru
        _
      %p140 = scmp.le.s32.totalorder 1, %s9
      %p141 = scmp.lt.s32.totalorder %s9, 3
      %p142 = pnand %p140, %p141
      %p143 = pneg %p142
      // Predicated region
      $region25: #{linear_regression_forward.1} parent=5 // pred_check
        _
      $region26: #{linear_regression_forward.1} parent=5 // pred_check_branch
        %145 = sbr.rel (%p142) target = $region28
      $region27: #{linear_regression_forward.1} parent=5 // pred_region
        %s146 = ssub.s32 %s9, 1
        // Predicated region
        $region29: #{linear_regression_forward.1} parent=27 // pred_check
          %p147 = pneg %p42
        $region30: #{linear_regression_forward.1} parent=27 // pred_check_branch
          %149 = sbr.rel (%p147) target = $region32
        $region31: #{linear_regression_forward.1} parent=27 // pred_region
          %151 = dma.done [#allocation3], 16
        $region32: #{linear_regression_forward.1} parent=27 // pred_fallthru
          _
        %152 = sfence
        %p153 = pneg %p42
        %p154 = pneg %p39
        %s155 = smul.u32 8, %s19
        %p156 = scmp.lt.s32.totalorder %s18, 1
        %s157 = scalar_select %p156, %s18, 1
        %p158 = scmp.lt.s32.totalorder %s155, 7
        %s159 = scalar_select %p158, %s155, 7
        %s160 = smul.addr %s157, 8
        %s161 = sadd.s32 %s159, %s160
        %s162 = smul.addr %s161, 8
        %s163 = scalar_lea.vmem %s1, %s162
        %p164 = pneg %p70
        %p165 = pneg %p67
        %p166 = pneg %p98
        %p167 = pneg %p95
        %s168 = smul.u32 8, %s19
        %p169 = scmp.lt.s32.totalorder %s18, 1
        %s170 = scalar_select %p169, %s18, 1
        %p171 = scmp.lt.s32.totalorder %s168, 7
        %s172 = scalar_select %p171, %s168, 7
        %s173 = smul.addr %s170, 8
        %s174 = sadd.s32 %s172, %s173
        %s175 = smul.addr %s174, 8
        %s176 = scalar_lea.vmem %s2, %s175
        %s177 = smul.u32 8, %s19
        %p178 = scmp.lt.s32.totalorder %s18, 1
        %s179 = scalar_select %p178, %s18, 1
        %p180 = scmp.lt.s32.totalorder %s177, 7
        %s181 = scalar_select %p180, %s177, 7
        %s182 = smul.addr %s179, 8
        %s183 = sadd.s32 %s181, %s182
        %s184 = smul.addr %s183, 8
        %s185 = scalar_lea.vmem %s1, %s184
        %s186 = smul.u32 8, %s19
        %s187 = smul.u32 8, %s19
        %p188 = scmp.lt.s32.totalorder %s18, 1
        %s189 = scalar_select %p188, %s18, 1
        %p190 = scmp.lt.s32.totalorder %s187, 7
        %s191 = scalar_select %p190, %s187, 7
        %s192 = smul.addr %s189, 8
        %s193 = sadd.s32 %s191, %s192
        %s194 = smul.addr %s193, 8
        %s195 = scalar_lea.vmem %s2, %s194
        %s196 = smul.u32 8, %s19
        %v197 = vld [vmem:[%s185] sm:$0xff]
        %v198 = vld [vmem:[%s185 + $0x8] sm:$0xff]
        %v199 = vld [vmem:[%s185 + $0x10] sm:$0xff]
        %v200 = vld [vmem:[%s185 + $0x18] sm:$0xff]
        %v201 = vld [vmem:[%s185 + $0x20] sm:$0xff]
        %v202 = vld [vmem:[%s185 + $0x28] sm:$0xff]
        %v203 = vld [vmem:[%s185 + $0x30] sm:$0xff]
        %v204 = vld [vmem:[%s185 + $0x38] sm:$0xff]
        %s205 = sld [smem:[#allocation2]]
        %v206 = vstv %s205
        %v207 = vmul.f32 %v206, %v197
        %v208 = vmul.f32 %v206, %v198
        %v209 = vmul.f32 %v206, %v199
        %v210 = vmul.f32 %v206, %v200
        %v211 = vmul.f32 %v206, %v201
        %v212 = vmul.f32 %v206, %v202
        %v213 = vmul.f32 %v206, %v203
        %v214 = vmul.f32 %v206, %v204
        %s215 = sld [smem:[#allocation2 + $0x1]]
        %v216 = vstv %s215
        %v217 = vadd.f32 %v207, %v216
        %v218 = vadd.f32 %v208, %v216
        %v219 = vadd.f32 %v209, %v216
        %v220 = vadd.f32 %v210, %v216
        %v221 = vadd.f32 %v211, %v216
        %v222 = vadd.f32 %v212, %v216
        %v223 = vadd.f32 %v213, %v216
        %v224 = vadd.f32 %v214, %v216
        %v225 = vmul.f32 %v217, %v197
        %v226 = vmul.f32 %v218, %v198
        %v227 = vmul.f32 %v219, %v199
        %v228 = vmul.f32 %v220, %v200
        %v229 = vmul.f32 %v221, %v201
        %v230 = vmul.f32 %v222, %v202
        %v231 = vmul.f32 %v223, %v203
        %v232 = vmul.f32 %v224, %v204
        %s233 = sld [smem:[#allocation2 + $0x2]]
        %v234 = vstv %s233
        %v235 = vadd.f32 %v225, %v234
        %v236 = vadd.f32 %v226, %v234
        %v237 = vadd.f32 %v227, %v234
        %v238 = vadd.f32 %v228, %v234
        %v239 = vadd.f32 %v229, %v234
        %v240 = vadd.f32 %v230, %v234
        %v241 = vadd.f32 %v231, %v234
        %v242 = vadd.f32 %v232, %v234
        %243 = vst [vmem:[%s195] sm:$0xff] %v235
        %244 = vst [vmem:[%s195 + $0x8] sm:$0xff] %v236
        %245 = vst [vmem:[%s195 + $0x10] sm:$0xff] %v237
        %246 = vst [vmem:[%s195 + $0x18] sm:$0xff] %v238
        %247 = vst [vmem:[%s195 + $0x20] sm:$0xff] %v239
        %248 = vst [vmem:[%s195 + $0x28] sm:$0xff] %v240
        %249 = vst [vmem:[%s195 + $0x30] sm:$0xff] %v241
        %250 = vst [vmem:[%s195 + $0x38] sm:$0xff] %v242
        %s251 = smul.u32 8, %s19
        %p252 = scmp.lt.s32.totalorder %s18, 1
        %s253 = scalar_select %p252, %s18, 1
        %p254 = scmp.lt.s32.totalorder %s251, 7
        %s255 = scalar_select %p254, %s251, 7
        %s256 = smul.addr %s253, 8
        %s257 = sadd.s32 %s255, %s256
        %s258 = smul.addr %s257, 8
        %s259 = scalar_lea.vmem %s2, %s258
        // Predicated region
        $region33: #{linear_regression_forward.1} parent=27 // pred_check
          %p260 = pneg %p95
        $region34: #{linear_regression_forward.1} parent=27 // pred_check_branch
          %262 = sbr.rel (%p260) target = $region36
        $region35: #{linear_regression_forward.1} parent=27 // pred_region
          %s263 = smul.u32 8, %s19
        $region36: #{linear_regression_forward.1} parent=27 // pred_fallthru
          _
      $region28: #{linear_regression_forward.1} parent=5 // pred_fallthru
        _
      %p264 = scmp.le.s32.totalorder 2, %s9
      // Predicated region
      $region37: #{linear_regression_forward.1} parent=5 // pred_check
        %p265 = pneg %p264
      $region38: #{linear_regression_forward.1} parent=5 // pred_check_branch
        %267 = sbr.rel (%p265) target = $region40
      $region39: #{linear_regression_forward.1} parent=5 // pred_region
        %s268 = ssub.s32 %s9, 2
        // Predicated region
        $region41: #{linear_regression_forward.1} parent=39 // pred_check
          %p269 = pneg %p101
        $region42: #{linear_regression_forward.1} parent=39 // pred_check_branch
          %271 = sbr.rel (%p269) target = $region44
        $region43: #{linear_regression_forward.1} parent=39 // pred_region
          %s272 = smul.u32 8, %s21
          %p273 = scmp.lt.s32.totalorder %s20, 1
          %s274 = scalar_select %p273, %s20, 1
          %p275 = scmp.lt.s32.totalorder %s272, 7
          %s276 = scalar_select %p275, %s272, 7
          %s277 = smul.addr %s274, 8
          %s278 = sadd.s32 %s276, %s277
          %s279 = smul.addr %s278, 8
          %s280 = scalar_lea.vmem %s2, %s279
        $region44: #{linear_regression_forward.1} parent=39 // pred_fallthru
          _
      $region40: #{linear_regression_forward.1} parent=5 // pred_fallthru
        _
    $region6: #{linear_regression_forward.1} parent=1 // loop_footer
      %s13 = sadd.s32 1, %s9
    $region7: #{linear_regression_forward.1} parent=1 // loop_footer_branch
      %8 = sbr.rel target = $region3
    $region8: #{linear_regression_forward.1} parent=1 // loop_exit
      _
    %281 = vsyncpa [#allocation3], 1
    %s282 = scalar_lea.sflag [#allocation3], 1
    %283 = vsyncpa %s282, 1

</llo_original>
